<compile_context>
chip_gen: v7x
topology: tpu7x:2x2x1
jax: 0.10.0
libtpu: 0.0.40
codegen_flags: <defaults>
</compile_context>

<pallas_src>
import functools

import jax
import jax.numpy as jnp
from jax.experimental import pallas as pl
from jax.experimental.pallas import tpu as pltpu


def normalize(x):
    return x / jnp.sum(x, axis=1, keepdims=True)


def _round_up(x, m):
    return (x + m - 1) // m * m


# ---------------------------------------------------------------------------
# Fused Pallas kernel: 6 linears + forward aggregation + reverse matmuls
# ---------------------------------------------------------------------------
def _fused_context_conv_kernel(
    x_ref, w_ref, b_ref, ctx_fwd_ref, ctx_rev_ref, out_ref, y_ref,
    *, n_spot_pad, segs,
):
    """segs: tuple of (type_index, x_offset, y_offset, padded_rows) for the 5
    non-spot node types.  All offsets / sizes are multiples of 8 (sublane
    aligned), so every slice below is a whole-tile access."""
    b = b_ref[...]                                    # (6, h) stacked biases

    # ---- spot linear (feeds the reverse-direction matmul) ------------------
    spot_y = (
        jnp.dot(x_ref[0:n_spot_pad, :], w_ref[0],
                preferred_element_type=jnp.float32)
        + b[0:1, :]
    )

    # ---- remaining 5 linears, packed into the Y scratch slab ---------------
    # Padded (zero) input rows give y == bias; the matching ctx_fwd columns are
    # zero so they contribute exactly 0.  The padded segments tile Y's rows
    # exactly, so no zero-initialisation of y_ref is needed.
    for k, xo, yo, n in segs:
        y_ref[yo:yo + n, :] = (
            jnp.dot(x_ref[xo:xo + n, :], w_ref[k],
                    preferred_element_type=jnp.float32)
            + b[k:k + 1, :]
        )

    # ---- forward: spot_out = relu(mean_k(ctx_k @ y_k)) = relu(C_fwd @ Y) ----
    # (the 1/5 mean scale is pre-folded into ctx_fwd at __init__)
    out_ref[0:n_spot_pad, :] = jnp.maximum(
        jnp.dot(ctx_fwd_ref[...], y_ref[...],
                preferred_element_type=jnp.float32),
        0.0)

    # ---- reverse: out_k = relu(ctx_k^T @ spot_y), one fused matmul ----------
    y_pad = segs[-1][2] + segs[-1][3]
    out_ref[n_spot_pad:n_spot_pad + y_pad, :] = jnp.maximum(
        jnp.dot(ctx_rev_ref[...], spot_y,
                preferred_element_type=jnp.float32),
        0.0)


# ---------------------------------------------------------------------------
# Module (parameter setup in plain JAX, mirrors the torch __init__)
# ---------------------------------------------------------------------------
class ContextConv:
    """JAX/Pallas port of the PyTorch ContextConv forward pass."""

    _ORDER = ("spot", "people", "season", "sex", "age", "time")

    def __init__(self, hidden_channels, sizes, key):
        self.hidden_channels = hidden_channels
        self.sizes = dict(sizes)
        h = hidden_channels
        n_spot = sizes["spot"]

        keys = jax.random.split(key, 32)
        k_it = iter(keys)

        # Synthetic (deterministic) raw context matrices, shape (n_spot, n_type),
        # standing in for the *.npy adjacency files.
        def raw_ctx(n_type):
            return jax.random.uniform(next(k_it), (n_spot, n_type), jnp.float32)

        people_raw = raw_ctx(sizes["people"])
        season_raw = raw_ctx(sizes["season"])
        sex_raw = raw_ctx(sizes["sex"])
        age_raw = raw_ctx(sizes["age"])
        time_raw = raw_ctx(sizes["time"])

        self.people_context = normalize(people_raw)
        self.season_context = normalize(season_raw)
        self.sex_context = normalize(sex_raw + 1e-06)
        self.age_context = normalize(age_raw)
        self.time_context = normalize(time_raw)
        self.people_context_T = normalize(people_raw.T)
        self.season_context_T = normalize(season_raw.T)
        self.sex_context_T = normalize(sex_raw.T + 1e-06)
        self.age_context_T = normalize(age_raw.T)
        self.time_context_T = normalize(time_raw.T)

        # ---- sublane-aligned packed layouts (offset table shared by x_all,
        # the Y scratch, ctx_fwd/ctx_rev padding, and the output slab) --------
        self.seg_pad = {name: _round_up(sizes[name], 8) for name in self._ORDER}
        self.n_spot_pad = self.seg_pad["spot"]

        self.x_offsets = {}
        off = 0
        for name in self._ORDER:
            self.x_offsets[name] = off
            off += self.seg_pad[name]
        self.n_total_pad = off

        ctx_names = self._ORDER[1:]
        self.y_offsets = {}
        off = 0
        for name in ctx_names:
            self.y_offsets[name] = off
            off += self.seg_pad[name]
        self.y_pad = off

        # ---- fused context operands: one matmul per direction ---------------
        fwd_ctx = {"people": self.people_context, "season": self.season_context,
                   "sex": self.sex_context, "age": self.age_context,
                   "time": self.time_context}
        rev_ctx = {"people": self.people_context_T,
                   "season": self.season_context_T,
                   "sex": self.sex_context_T, "age": self.age_context_T,
                   "time": self.time_context_T}
        num_ctx = float(len(ctx_names))
        ctx_fwd = jnp.zeros((self.n_spot_pad, self.y_pad), jnp.float32)
        ctx_rev = jnp.zeros((self.y_pad, self.n_spot_pad), jnp.float32)
        for name in ctx_names:
            n = sizes[name]
            yo = self.y_offsets[name]
            # 1/5 mean scale folded into the (constant) forward context matrix.
            ctx_fwd = ctx_fwd.at[:n_spot, yo:yo + n].set(
                fwd_ctx[name] * (1.0 / num_ctx))
            ctx_rev = ctx_rev.at[yo:yo + n, :n_spot].set(rev_ctx[name])
        self.ctx_fwd = ctx_fwd        # (n_spot_pad, y_pad)
        self.ctx_rev = ctx_rev        # (y_pad, n_spot_pad)

        # nn.Linear(h, h) params (torch default uniform init), stored with the
        # weight already transposed so the kernel computes x @ W^T + b.
        bound = 1.0 / (h ** 0.5)

        def linear_params():
            w = jax.random.uniform(next(k_it), (h, h), jnp.float32, -bound, bound)
            b = jax.random.uniform(next(k_it), (h,), jnp.float32, -bound, bound)
            return w.T, b

        self.spot_lin = linear_params()
        self.people_lin = linear_params()
        self.season_lin = linear_params()
        self.sex_lin = linear_params()
        self.age_lin = linear_params()
        self.time_lin = linear_params()

        lins = [self.spot_lin, self.people_lin, self.season_lin,
                self.sex_lin, self.age_lin, self.time_lin]
        self.w_all = jnp.stack([w for w, _ in lins], axis=0)   # (6, h, h)
        self.b_all = jnp.stack([b for _, b in lins], axis=0)   # (6, h)
        # self.linear (nn.Linear(5*h, h)) is defined in the torch module but
        # never used in forward(), so it is omitted here.

    def __call__(self, x_dict):
        h = self.hidden_channels
        order = self._ORDER
        n_spot = self.sizes["spot"]
        n_spot_pad = self.n_spot_pad
        n_out = n_spot_pad + self.y_pad

        # One contiguous input slab; each per-type segment is zero-padded to a
        # multiple of 8 rows so in-kernel slices are whole-sublane tiles.
        x_all = jnp.concatenate(
            [jnp.pad(x_dict[name],
                     ((0, self.seg_pad[name] - self.sizes[name]), (0, 0)))
             for name in order],
            axis=0)

        segs = tuple(
            (k, self.x_offsets[name], self.y_offsets[name], self.seg_pad[name])
            for k, name in enumerate(order) if k > 0)

        kernel = functools.partial(
            _fused_context_conv_kernel, n_spot_pad=n_spot_pad, segs=segs)

        flops = (2 * self.n_total_pad * h * h               # 6 linears
                 + 2 * n_spot_pad * self.y_pad * h          # forward aggregation
                 + 2 * self.y_pad * n_spot_pad * h)         # reverse matmul
        bytes_accessed = 4 * (x_all.size + self.w_all.size + self.b_all.size
                              + self.ctx_fwd.size + self.ctx_rev.size
                              + n_out * h)

        # TODO(synk): at non-toy sizes, row-tile n_spot on a leading "parallel"
        # grid axis (uses both v7x TensorCores, keeps double-buffered tiles
        # inside the 64 MiB v7x VMEM) and cast MXU operands to bf16 on v6e/v7x.
        out_slab = pl.pallas_call(
            kernel,
            out_shape=jax.ShapeDtypeStruct((n_out, h), jnp.float32),
            grid=(1,),
            in_specs=[
                pl.BlockSpec((self.n_total_pad, h), lambda i: (0, 0)),
                pl.BlockSpec(self.w_all.shape, lambda i: (0, 0, 0)),
                pl.BlockSpec(self.b_all.shape, lambda i: (0, 0)),
                pl.BlockSpec(self.ctx_fwd.shape, lambda i: (0, 0)),
                pl.BlockSpec(self.ctx_rev.shape, lambda i: (0, 0)),
            ],
            out_specs=pl.BlockSpec((n_out, h), lambda i: (0, 0)),
            scratch_shapes=[pltpu.VMEM((self.y_pad, h), jnp.float32)],
            compiler_params=pltpu.CompilerParams(
                dimension_semantics=("arbitrary",)),
            cost_estimate=pl.CostEstimate(
                flops=flops, transcendentals=0, bytes_accessed=bytes_accessed),
        )(x_all, self.w_all, self.b_all, self.ctx_fwd, self.ctx_rev)

        # Static slices of the lane-dense output slab (free, outside the kernel).
        spot_out = out_slab[:n_spot]
        rev_parts = {}
        for name in order[1:]:
            yo = self.y_offsets[name]
            rev_parts[name] = out_slab[n_spot_pad + yo:
                                       n_spot_pad + yo + self.sizes[name]]

        return {
            "spot": spot_out,
            "people": rev_parts["people"],
            "sex": rev_parts["sex"],
            "time": rev_parts["time"],
            "age": rev_parts["age"],
            "season": rev_parts["season"],
        }

    # Pure-JAX reference for correctness checking (unfused math).
    def reference(self, x_dict):
        def lin(x, p):
            return x @ p[0] + p[1]

        spot_y = lin(x_dict["spot"], self.spot_lin)
        people_y = lin(x_dict["people"], self.people_lin)
        season_y = lin(x_dict["season"], self.season_lin)
        sex_y = lin(x_dict["sex"], self.sex_lin)
        age_y = lin(x_dict["age"], self.age_lin)
        time_y = lin(x_dict["time"], self.time_lin)

        stacked = jnp.stack(
            [
                self.people_context @ people_y,
                self.season_context @ season_y,
                self.sex_context @ sex_y,
                self.age_context @ age_y,
                self.time_context @ time_y,
            ],
            axis=1,
        )
        out = {
            "spot": jnp.mean(stacked, axis=1),
            "people": self.people_context_T @ spot_y,
            "sex": self.sex_context_T @ spot_y,
            "time": self.time_context_T @ spot_y,
            "age": self.age_context_T @ spot_y,
            "season": self.season_context_T @ spot_y,
        }
        return {k: jnp.maximum(v, 0.0) for k, v in out.items()}


if __name__ == "__main__":
    hidden = 32
    sizes = {"spot": 16, "people": 8, "season": 4, "sex": 2, "age": 6, "time": 24}

    key = jax.random.PRNGKey(0)
    k_mod, k_in = jax.random.split(key)
    conv = ContextConv(hidden, sizes, k_mod)

    in_keys = jax.random.split(k_in, len(sizes))
    x_dict = {
        name: jax.random.normal(k, (n, hidden), jnp.float32)
        for (name, n), k in zip(sizes.items(), in_keys)
    }

    out = conv(x_dict)
    out = {k: jax.block_until_ready(v) for k, v in out.items()}

    ref = conv.reference(x_dict)
    for k in out:
        assert out[k].shape == ref[k].shape, k
        assert jnp.allclose(out[k], ref[k], atol=1e-4, rtol=1e-4), k

    print("KERNEL_OK")
</pallas_src>

<mosaic_0001>
module attributes {stable_mosaic.version = 11 : i64} {
  func.func @_fused_context_conv_kernel(%arg0: i32, %arg1: memref<72x32xf32, #tpu.memory_space<vmem>>, %arg2: memref<6x32x32xf32, #tpu.memory_space<vmem>>, %arg3: memref<6x32xf32, #tpu.memory_space<vmem>>, %arg4: memref<16x56xf32, #tpu.memory_space<vmem>>, %arg5: memref<56x16xf32, #tpu.memory_space<vmem>>, %arg6: memref<72x32xf32, #tpu.memory_space<vmem>>, %arg7: memref<56x32xf32, #tpu.memory_space<vmem>>) attributes {dimension_semantics = [#tpu.dimension_semantics<arbitrary>], iteration_bounds = array<i64: 1>, scalar_prefetch = 0 : i64, scratch_operands = 1 : i64, tpu.core_type = #tpu.core_type<tc>, window_params = [{pipeline_mode = #tpu.pipeline_mode<synchronous>, transform_indices = @transform_0, window_bounds = array<i64: 72, 32>}, {pipeline_mode = #tpu.pipeline_mode<synchronous>, transform_indices = @transform_1, window_bounds = array<i64: 6, 32, 32>}, {pipeline_mode = #tpu.pipeline_mode<synchronous>, transform_indices = @transform_2, window_bounds = array<i64: 6, 32>}, {pipeline_mode = #tpu.pipeline_mode<synchronous>, transform_indices = @transform_3, window_bounds = array<i64: 16, 56>}, {pipeline_mode = #tpu.pipeline_mode<synchronous>, transform_indices = @transform_4, window_bounds = array<i64: 56, 16>}, {pipeline_mode = #tpu.pipeline_mode<synchronous>, transform_indices = @transform_5, window_bounds = array<i64: 72, 32>}]} {
    %c0 = arith.constant 0 : index
    %c0_0 = arith.constant 0 : index
    %0 = vector.load %arg3[%c0, %c0_0] : memref<6x32xf32, #tpu.memory_space<vmem>>, vector<6x32xf32>
    %c0_1 = arith.constant 0 : index
    %c0_2 = arith.constant 0 : index
    %1 = vector.load %arg1[%c0_1, %c0_2] : memref<72x32xf32, #tpu.memory_space<vmem>>, vector<16x32xf32>
    %c0_3 = arith.constant 0 : index
    %c0_4 = arith.constant 0 : index
    %c0_5 = arith.constant 0 : index
    %2 = vector.load %arg2[%c0_3, %c0_4, %c0_5] : memref<6x32x32xf32, #tpu.memory_space<vmem>>, vector<1x32x32xf32>
    %3 = vector.shape_cast %2 : vector<1x32x32xf32> to vector<32x32xf32>
    %cst = arith.constant dense<0.000000e+00> : vector<16x32xf32>
    %4 = tpu.matmul %1, %3, %cst {dimension_numbers = #tpu.dot_dimension_numbers<[1], [0], [0], [1], [0, 0, 1, 1], [], []>} : vector<16x32xf32>, vector<32x32xf32>, vector<16x32xf32> -> vector<16x32xf32>
    %5 = vector.extract_strided_slice %0 {offsets = [0, 0], sizes = [1, 32], strides = [1, 1]} : vector<6x32xf32> to vector<1x32xf32>
    %6 = vector.broadcast %5 : vector<1x32xf32> to vector<16x32xf32>
    %7 = arith.addf %4, %6 : vector<16x32xf32>
    %c16 = arith.constant 16 : index
    %c0_6 = arith.constant 0 : index
    %8 = vector.load %arg1[%c16, %c0_6] : memref<72x32xf32, #tpu.memory_space<vmem>>, vector<8x32xf32>
    %c1 = arith.constant 1 : index
    %c0_7 = arith.constant 0 : index
    %c0_8 = arith.constant 0 : index
    %9 = vector.load %arg2[%c1, %c0_7, %c0_8] : memref<6x32x32xf32, #tpu.memory_space<vmem>>, vector<1x32x32xf32>
    %10 = vector.shape_cast %9 : vector<1x32x32xf32> to vector<32x32xf32>
    %cst_9 = arith.constant dense<0.000000e+00> : vector<8x32xf32>
    %11 = tpu.matmul %8, %10, %cst_9 {dimension_numbers = #tpu.dot_dimension_numbers<[1], [0], [0], [1], [0, 0, 1, 1], [], []>} : vector<8x32xf32>, vector<32x32xf32>, vector<8x32xf32> -> vector<8x32xf32>
    %12 = vector.extract_strided_slice %0 {offsets = [1, 0], sizes = [1, 32], strides = [1, 1]} : vector<6x32xf32> to vector<1x32xf32>
    %13 = vector.broadcast %12 : vector<1x32xf32> to vector<8x32xf32>
    %14 = arith.addf %11, %13 : vector<8x32xf32>
    %c0_10 = arith.constant 0 : index
    %c0_11 = arith.constant 0 : index
    %15 = vector.load %arg7[%c0_10, %c0_11] : memref<56x32xf32, #tpu.memory_space<vmem>>, vector<8x32xf32>
    tpu.vector_store %arg7[%c0_10, %c0_11], %14 {strides = array<i32>} : memref<56x32xf32, #tpu.memory_space<vmem>>, vector<8x32xf32>,
    %c24 = arith.constant 24 : index
    %c0_12 = arith.constant 0 : index
    %16 = vector.load %arg1[%c24, %c0_12] : memref<72x32xf32, #tpu.memory_space<vmem>>, vector<8x32xf32>
    %c2 = arith.constant 2 : index
    %c0_13 = arith.constant 0 : index
    %c0_14 = arith.constant 0 : index
    %17 = vector.load %arg2[%c2, %c0_13, %c0_14] : memref<6x32x32xf32, #tpu.memory_space<vmem>>, vector<1x32x32xf32>
    %18 = vector.shape_cast %17 : vector<1x32x32xf32> to vector<32x32xf32>
    %cst_15 = arith.constant dense<0.000000e+00> : vector<8x32xf32>
    %19 = tpu.matmul %16, %18, %cst_15 {dimension_numbers = #tpu.dot_dimension_numbers<[1], [0], [0], [1], [0, 0, 1, 1], [], []>} : vector<8x32xf32>, vector<32x32xf32>, vector<8x32xf32> -> vector<8x32xf32>
    %20 = vector.extract_strided_slice %0 {offsets = [2, 0], sizes = [1, 32], strides = [1, 1]} : vector<6x32xf32> to vector<1x32xf32>
    %21 = vector.broadcast %20 : vector<1x32xf32> to vector<8x32xf32>
    %22 = arith.addf %19, %21 : vector<8x32xf32>
    %c8 = arith.constant 8 : index
    %c0_16 = arith.constant 0 : index
    %23 = vector.load %arg7[%c8, %c0_16] : memref<56x32xf32, #tpu.memory_space<vmem>>, vector<8x32xf32>
    tpu.vector_store %arg7[%c8, %c0_16], %22 {strides = array<i32>} : memref<56x32xf32, #tpu.memory_space<vmem>>, vector<8x32xf32>,
    %c32 = arith.constant 32 : index
    %c0_17 = arith.constant 0 : index
    %24 = vector.load %arg1[%c32, %c0_17] : memref<72x32xf32, #tpu.memory_space<vmem>>, vector<8x32xf32>
    %c3 = arith.constant 3 : index
    %c0_18 = arith.constant 0 : index
    %c0_19 = arith.constant 0 : index
    %25 = vector.load %arg2[%c3, %c0_18, %c0_19] : memref<6x32x32xf32, #tpu.memory_space<vmem>>, vector<1x32x32xf32>
    %26 = vector.shape_cast %25 : vector<1x32x32xf32> to vector<32x32xf32>
    %cst_20 = arith.constant dense<0.000000e+00> : vector<8x32xf32>
    %27 = tpu.matmul %24, %26, %cst_20 {dimension_numbers = #tpu.dot_dimension_numbers<[1], [0], [0], [1], [0, 0, 1, 1], [], []>} : vector<8x32xf32>, vector<32x32xf32>, vector<8x32xf32> -> vector<8x32xf32>
    %28 = vector.extract_strided_slice %0 {offsets = [3, 0], sizes = [1, 32], strides = [1, 1]} : vector<6x32xf32> to vector<1x32xf32>
    %29 = vector.broadcast %28 : vector<1x32xf32> to vector<8x32xf32>
    %30 = arith.addf %27, %29 : vector<8x32xf32>
    %c16_21 = arith.constant 16 : index
    %c0_22 = arith.constant 0 : index
    %31 = vector.load %arg7[%c16_21, %c0_22] : memref<56x32xf32, #tpu.memory_space<vmem>>, vector<8x32xf32>
    tpu.vector_store %arg7[%c16_21, %c0_22], %30 {strides = array<i32>} : memref<56x32xf32, #tpu.memory_space<vmem>>, vector<8x32xf32>,
    %c40 = arith.constant 40 : index
    %c0_23 = arith.constant 0 : index
    %32 = vector.load %arg1[%c40, %c0_23] : memref<72x32xf32, #tpu.memory_space<vmem>>, vector<8x32xf32>
    %c4 = arith.constant 4 : index
    %c0_24 = arith.constant 0 : index
    %c0_25 = arith.constant 0 : index
    %33 = vector.load %arg2[%c4, %c0_24, %c0_25] : memref<6x32x32xf32, #tpu.memory_space<vmem>>, vector<1x32x32xf32>
    %34 = vector.shape_cast %33 : vector<1x32x32xf32> to vector<32x32xf32>
    %cst_26 = arith.constant dense<0.000000e+00> : vector<8x32xf32>
    %35 = tpu.matmul %32, %34, %cst_26 {dimension_numbers = #tpu.dot_dimension_numbers<[1], [0], [0], [1], [0, 0, 1, 1], [], []>} : vector<8x32xf32>, vector<32x32xf32>, vector<8x32xf32> -> vector<8x32xf32>
    %36 = vector.extract_strided_slice %0 {offsets = [4, 0], sizes = [1, 32], strides = [1, 1]} : vector<6x32xf32> to vector<1x32xf32>
    %37 = vector.broadcast %36 : vector<1x32xf32> to vector<8x32xf32>
    %38 = arith.addf %35, %37 : vector<8x32xf32>
    %c24_27 = arith.constant 24 : index
    %c0_28 = arith.constant 0 : index
    %39 = vector.load %arg7[%c24_27, %c0_28] : memref<56x32xf32, #tpu.memory_space<vmem>>, vector<8x32xf32>
    tpu.vector_store %arg7[%c24_27, %c0_28], %38 {strides = array<i32>} : memref<56x32xf32, #tpu.memory_space<vmem>>, vector<8x32xf32>,
    %c48 = arith.constant 48 : index
    %c0_29 = arith.constant 0 : index
    %40 = vector.load %arg1[%c48, %c0_29] : memref<72x32xf32, #tpu.memory_space<vmem>>, vector<24x32xf32>
    %c5 = arith.constant 5 : index
    %c0_30 = arith.constant 0 : index
    %c0_31 = arith.constant 0 : index
    %41 = vector.load %arg2[%c5, %c0_30, %c0_31] : memref<6x32x32xf32, #tpu.memory_space<vmem>>, vector<1x32x32xf32>
    %42 = vector.shape_cast %41 : vector<1x32x32xf32> to vector<32x32xf32>
    %cst_32 = arith.constant dense<0.000000e+00> : vector<24x32xf32>
    %43 = tpu.matmul %40, %42, %cst_32 {dimension_numbers = #tpu.dot_dimension_numbers<[1], [0], [0], [1], [0, 0, 1, 1], [], []>} : vector<24x32xf32>, vector<32x32xf32>, vector<24x32xf32> -> vector<24x32xf32>
    %44 = vector.extract_strided_slice %0 {offsets = [5, 0], sizes = [1, 32], strides = [1, 1]} : vector<6x32xf32> to vector<1x32xf32>
    %45 = vector.broadcast %44 : vector<1x32xf32> to vector<24x32xf32>
    %46 = arith.addf %43, %45 : vector<24x32xf32>
    %c32_33 = arith.constant 32 : index
    %c0_34 = arith.constant 0 : index
    %47 = vector.load %arg7[%c32_33, %c0_34] : memref<56x32xf32, #tpu.memory_space<vmem>>, vector<24x32xf32>
    tpu.vector_store %arg7[%c32_33, %c0_34], %46 {strides = array<i32>} : memref<56x32xf32, #tpu.memory_space<vmem>>, vector<24x32xf32>,
    %c0_35 = arith.constant 0 : index
    %c0_36 = arith.constant 0 : index
    %48 = vector.load %arg4[%c0_35, %c0_36] : memref<16x56xf32, #tpu.memory_space<vmem>>, vector<16x56xf32>
    %c0_37 = arith.constant 0 : index
    %c0_38 = arith.constant 0 : index
    %49 = vector.load %arg7[%c0_37, %c0_38] : memref<56x32xf32, #tpu.memory_space<vmem>>, vector<56x32xf32>
    %cst_39 = arith.constant dense<0.000000e+00> : vector<16x32xf32>
    %50 = tpu.matmul %48, %49, %cst_39 {dimension_numbers = #tpu.dot_dimension_numbers<[1], [0], [0], [1], [0, 0, 1, 1], [], []>} : vector<16x56xf32>, vector<56x32xf32>, vector<16x32xf32> -> vector<16x32xf32>
    %cst_40 = arith.constant 0.000000e+00 : f32
    %51 = vector.broadcast %cst_40 : f32 to vector<16x32xf32>
    %52 = arith.maximumf %50, %51 : vector<16x32xf32>
    %c0_41 = arith.constant 0 : index
    %c0_42 = arith.constant 0 : index
    %53 = vector.load %arg6[%c0_41, %c0_42] : memref<72x32xf32, #tpu.memory_space<vmem>>, vector<16x32xf32>
    tpu.vector_store %arg6[%c0_41, %c0_42], %52 {strides = array<i32>} : memref<72x32xf32, #tpu.memory_space<vmem>>, vector<16x32xf32>,
    %c0_43 = arith.constant 0 : index
    %c0_44 = arith.constant 0 : index
    %54 = vector.load %arg5[%c0_43, %c0_44] : memref<56x16xf32, #tpu.memory_space<vmem>>, vector<56x16xf32>
    %cst_45 = arith.constant dense<0.000000e+00> : vector<56x32xf32>
    %55 = tpu.matmul %54, %7, %cst_45 {dimension_numbers = #tpu.dot_dimension_numbers<[1], [0], [0], [1], [0, 0, 1, 1], [], []>} : vector<56x16xf32>, vector<16x32xf32>, vector<56x32xf32> -> vector<56x32xf32>
    %cst_46 = arith.constant 0.000000e+00 : f32
    %56 = vector.broadcast %cst_46 : f32 to vector<56x32xf32>
    %57 = arith.maximumf %55, %56 : vector<56x32xf32>
    %c16_47 = arith.constant 16 : index
    %c0_48 = arith.constant 0 : index
    %58 = vector.load %arg6[%c16_47, %c0_48] : memref<72x32xf32, #tpu.memory_space<vmem>>, vector<56x32xf32>
    tpu.vector_store %arg6[%c16_47, %c0_48], %57 {strides = array<i32>} : memref<72x32xf32, #tpu.memory_space<vmem>>, vector<56x32xf32>,
    return
  }
  func.func @transform_0(%arg0: i32) -> (i32, i32) {
    %c0_i32 = arith.constant 0 : i32
    %c0_i32_0 = arith.constant 0 : i32
    %c0_i32_1 = arith.constant 0 : i32
    return %c0_i32, %c0_i32_0 : i32, i32
  }
  func.func @transform_1(%arg0: i32) -> (i32, i32, i32) {
    %c0_i32 = arith.constant 0 : i32
    %c0_i32_0 = arith.constant 0 : i32
    %c0_i32_1 = arith.constant 0 : i32
    %c0_i32_2 = arith.constant 0 : i32
    return %c0_i32, %c0_i32_0, %c0_i32_1 : i32, i32, i32
  }
  func.func @transform_2(%arg0: i32) -> (i32, i32) {
    %c0_i32 = arith.constant 0 : i32
    %c0_i32_0 = arith.constant 0 : i32
    %c0_i32_1 = arith.constant 0 : i32
    return %c0_i32, %c0_i32_0 : i32, i32
  }
  func.func @transform_3(%arg0: i32) -> (i32, i32) {
    %c0_i32 = arith.constant 0 : i32
    %c0_i32_0 = arith.constant 0 : i32
    %c0_i32_1 = arith.constant 0 : i32
    return %c0_i32, %c0_i32_0 : i32, i32
  }
  func.func @transform_4(%arg0: i32) -> (i32, i32) {
    %c0_i32 = arith.constant 0 : i32
    %c0_i32_0 = arith.constant 0 : i32
    %c0_i32_1 = arith.constant 0 : i32
    return %c0_i32, %c0_i32_0 : i32, i32
  }
  func.func @transform_5(%arg0: i32) -> (i32, i32) {
    %c0_i32 = arith.constant 0 : i32
    %c0_i32_0 = arith.constant 0 : i32
    %c0_i32_1 = arith.constant 0 : i32
    return %c0_i32, %c0_i32_0 : i32, i32
  }
}

</mosaic_0001>

<llo_original>
// kernel: tpu_custom_call.1
$region0: #{tpu_custom_call.1}
  #allocation0 [shape = 'u32[]', space=smem, size = 0x4, offset = 0x4, fixed_abs, tag = 'smem constant byte address 0x4 - core index']
  #allocation1 [shape = 'u32[144,128]{1,0:T(1,128)}', space=vmem, size = 0x12000, scoped, tag = 'internal scratch']
  #allocation2 [shape = 'f32[56,32]{1,0:T(8,128)}', space=vmem, size = 0x7000, scoped, tag = 'scratch operand']
  %s0 = inlined_call_operand.vmem [shape: f32[72,32], index: 0, kind: input, shape index: {}]
  %s1 = inlined_call_operand.hbm [shape: f32[6,32,32], index: 1, kind: input, shape index: {}]
  %s2 = inlined_call_operand.vmem [shape: f32[6,32], index: 2, kind: input, shape index: {}]
  %s3 = inlined_call_operand.vmem [shape: f32[16,56], index: 3, kind: input, shape index: {}]
  %s4 = inlined_call_operand.vmem [shape: f32[56,16], index: 4, kind: input, shape index: {}]
  %s5 = inlined_call_operand.vmem [shape: f32[72,32], index: 5, kind: output, shape index: {}]
  %s6 = sld [smem:[#allocation0]]
  $region34: #{tpu_custom_call.1} parent=0
    _
  %s8 = ssub.s32 1, %s6
  %s9 = scalar_select 0, %s8, %s6
  $region1: #{tpu_custom_call.1} parent=0
    #allocation3 [shape = 'u8[98304]{0}', space=vmem, size = 0x18000, scoped, tag = 'input window, operand 1, single buffered']
    #allocation4 [shape = 's32[1]{0}', space=sflag, size = 0x4, scoped, tag = 'scoped memory for tpu_custom_call.1']
    %10 = vsyncpa [#allocation4], 0
    // Predicated region
    $region2: #{tpu_custom_call.1} parent=1 // pred_check
      _
    $region3: #{tpu_custom_call.1} parent=1 // pred_check_branch
      %12 = sbr.rel (0) target = $region5
    $region4: #{tpu_custom_call.1} parent=1 // pred_region
      _
    $region5: #{tpu_custom_call.1} parent=1 // pred_fallthru
      _
    // Predicated region
    $region6: #{tpu_custom_call.1} parent=1 // pred_check
      _
    $region7: #{tpu_custom_call.1} parent=1 // pred_check_branch
      %14 = sbr.rel (0) target = $region9
    $region8: #{tpu_custom_call.1} parent=1 // pred_region
      %s16 = ssub.s32 3072, 3072
      %17 = vsyncadd [#allocation4], %s16
      %s18 = sshll.u32 [#allocation3], 4
      %s19 = int_to_ptr.vmem [resolvable:$true] %s18
      %24 = dma.hbm_to_vmem [thread:$0]  %s1, 3072, %s19, [#allocation4], 128, 128, 8
    $region9: #{tpu_custom_call.1} parent=1 // pred_fallthru
      _
    // Predicated region
    $region10: #{tpu_custom_call.1} parent=1 // pred_check
      _
    $region11: #{tpu_custom_call.1} parent=1 // pred_check_branch
      %26 = sbr.rel (0) target = $region13
    $region12: #{tpu_custom_call.1} parent=1 // pred_region
      _
    $region13: #{tpu_custom_call.1} parent=1 // pred_fallthru
      _
    // Predicated region
    $region14: #{tpu_custom_call.1} parent=1 // pred_check
      _
    $region15: #{tpu_custom_call.1} parent=1 // pred_check_branch
      %28 = sbr.rel (0) target = $region17
    $region16: #{tpu_custom_call.1} parent=1 // pred_region
      _
    $region17: #{tpu_custom_call.1} parent=1 // pred_fallthru
      _
    // Predicated region
    $region18: #{tpu_custom_call.1} parent=1 // pred_check
      _
    $region19: #{tpu_custom_call.1} parent=1 // pred_check_branch
      %30 = sbr.rel (0) target = $region21
    $region20: #{tpu_custom_call.1} parent=1 // pred_region
      _
    $region21: #{tpu_custom_call.1} parent=1 // pred_fallthru
      _
    // Predicated region
    $region22: #{tpu_custom_call.1} parent=1 // pred_check
      _
    $region23: #{tpu_custom_call.1} parent=1 // pred_check_branch
      %32 = sbr.rel (0) target = $region25
    $region24: #{tpu_custom_call.1} parent=1 // pred_region
      %33 = dma.done [#allocation4], 3072
    $region25: #{tpu_custom_call.1} parent=1 // pred_fallthru
      _
    %v34 = vld [vmem:[%s2] sm:$0x3f]
    %v35 = vld [vmem:[%s0] sm:$0xff]
    %v36 = vld [vmem:[%s0 + $0x8] sm:$0xff]
    %v37 = vld [vmem:[#allocation3] sm:$0xff]
    %v38 = vld [vmem:[#allocation3 + $0x8] sm:$0xff]
    %v39 = vld [vmem:[#allocation3 + $0x10] sm:$0xff]
    %v40 = vld [vmem:[#allocation3 + $0x18] sm:$0xff]
    %v41 = vlaneseq
    %v42 = vshrl.u32 %v41, 7
    %v43 = vsub.s32 0, %v42
    %v44 = vrot.slane %v34, %v43
    %vm45 = vcmask 261120
    %v47 = vsel %vm45, %v35, 0
    %v50 = vsel %vm45, %v36, 0
    %52 = vmatprep.subr.mxu0 0.0
    %53 = vmatpush1.msra.mxu0 %v37
    %54 = vmatprep.subr.mxu0 0.0
    %55 = vmatpush1.msra.mxu0 %v38
    %56 = vmatprep.subr.mxu0 0.0
    %57 = vmatpush1.msra.mxu0 %v39
    %58 = vmatprep.subr.mxu0 0.0
    %59 = vmatpush1.msra.mxu0 %v40
    %60 = vmatprep.subr.mxu0 0.0
    %61 = vmatpush1.msra.mxu0 0.0
    %62 = vmatprep.subr.mxu0 0.0
    %63 = vmatpush1.msra.mxu0 0.0
    %64 = vmatprep.subr.mxu0 0.0
    %65 = vmatpush1.msra.mxu0 0.0
    %66 = vmatprep.subr.mxu0 0.0
    %67 = vmatpush1.msra.mxu0 0.0
    %68 = vmatprep.subr.mxu0 0.0
    %69 = vmatpush1.msra.mxu0 0.0
    %70 = vmatprep.subr.mxu0 0.0
    %71 = vmatpush1.msra.mxu0 0.0
    %72 = vmatprep.subr.mxu0 0.0
    %73 = vmatpush1.msra.mxu0 0.0
    %74 = vmatprep.subr.mxu0 0.0
    %75 = vmatpush1.msra.mxu0 0.0
    %76 = vmatprep.subr.mxu0 0.0
    %77 = vmatpush1.msra.mxu0 0.0
    %78 = vmatprep.subr.mxu0 0.0
    %79 = vmatpush1.msra.mxu0 0.0
    %80 = vmatprep.subr.mxu0 0.0
    %81 = vmatpush1.msra.mxu0 0.0
    %82 = vmatprep.subr.mxu0 0.0
    %83 = vmatpush1.msra.mxu0 0.0
    %84 = vmatprep.subr.mxu0 0.0
    %85 = vmatpush1.msra.mxu0 0.0
    %86 = vmatprep.subr.mxu0 0.0
    %87 = vmatpush1.msra.mxu0 0.0
    %88 = vmatprep.subr.mxu0 0.0
    %89 = vmatpush1.msra.mxu0 0.0
    %90 = vmatprep.subr.mxu0 0.0
    %91 = vmatpush1.msra.mxu0 0.0
    %92 = vmatprep.subr.mxu0 0.0
    %93 = vmatpush1.msra.mxu0 0.0
    %94 = vmatprep.subr.mxu0 0.0
    %95 = vmatpush1.msra.mxu0 0.0
    %96 = vmatprep.subr.mxu0 0.0
    %97 = vmatpush1.msra.mxu0 0.0
    %98 = vmatprep.subr.mxu0 0.0
    %99 = vmatpush1.msra.mxu0 0.0
    %100 = vmatprep.subr.mxu0 0.0
    %101 = vmatpush1.msra.mxu0 0.0
    %102 = vmatprep.subr.mxu0 0.0
    %103 = vmatpush1.msra.mxu0 0.0
    %104 = vmatprep.subr.mxu0 0.0
    %105 = vmatpush1.msra.mxu0 0.0
    %106 = vmatprep.subr.mxu0 0.0
    %107 = vmatpush1.msra.mxu0 0.0
    %108 = vmatprep.subr.mxu0 0.0
    %109 = vmatpush1.msra.mxu0 0.0
    %110 = vmatprep.subr.mxu0 0.0
    %111 = vmatpush1.msra.mxu0 0.0
    %112 = vmatprep.subr.mxu0 0.0
    %113 = vmatpush1.msra.mxu0 0.0
    %114 = vmatprep.subr.mxu0 0.0
    %115 = vmatpush1.msra.mxu0 0.0
    %116 = vmatprep.mubr.f32.mxu0 0.0
    %117 = vmatmul.mubr.f32.gmra.mrb[0].mxu0 %v47
    %v118 = vpop.f32.mrb[0].mxu0
    %v119 = vadd.f32 %v44, %v118
    %v120 = vpop.f32.mrb[0].mxu0
    %121 = vmatprep.mubr.f32.mxu0 0.0
    %122 = vmatmul.mubr.f32.gmra.mrb[0].mxu0 %v50
    %v123 = vpop.f32.mrb[0].mxu0
    %v124 = vadd.f32 %v44, %v123
    %v125 = vpop.f32.mrb[0].mxu0
    %126 = vdwg.mxu0
    %v127 = vld [vmem:[%s0 + $0x10] sm:$0xff]
    %s128 = scalar_lea.vmem [#allocation3], 32
    %v129 = vld [vmem:[%s128] sm:$0xff]
    %v130 = vld [vmem:[%s128 + $0x8] sm:$0xff]
    %v131 = vld [vmem:[%s128 + $0x10] sm:$0xff]
    %v132 = vld [vmem:[%s128 + $0x18] sm:$0xff]
    %v133 = vlaneseq
    %v134 = vshrl.u32 %v133, 7
    %v135 = vsub.s32 1, %v134
    %v136 = vrot.slane %v34, %v135
    %v138 = vsel %vm45, %v127, 0
    %140 = vmatprep.subr.mxu0 0.0
    %141 = vmatpush1.msra.mxu0 %v129
    %142 = vmatprep.subr.mxu0 0.0
    %143 = vmatpush1.msra.mxu0 %v130
    %144 = vmatprep.subr.mxu0 0.0
    %145 = vmatpush1.msra.mxu0 %v131
    %146 = vmatprep.subr.mxu0 0.0
    %147 = vmatpush1.msra.mxu0 %v132
    %148 = vmatprep.subr.mxu0 0.0
    %149 = vmatpush1.msra.mxu0 0.0
    %150 = vmatprep.subr.mxu0 0.0
    %151 = vmatpush1.msra.mxu0 0.0
    %152 = vmatprep.subr.mxu0 0.0
    %153 = vmatpush1.msra.mxu0 0.0
    %154 = vmatprep.subr.mxu0 0.0
    %155 = vmatpush1.msra.mxu0 0.0
    %156 = vmatprep.subr.mxu0 0.0
    %157 = vmatpush1.msra.mxu0 0.0
    %158 = vmatprep.subr.mxu0 0.0
    %159 = vmatpush1.msra.mxu0 0.0
    %160 = vmatprep.subr.mxu0 0.0
    %161 = vmatpush1.msra.mxu0 0.0
    %162 = vmatprep.subr.mxu0 0.0
    %163 = vmatpush1.msra.mxu0 0.0
    %164 = vmatprep.subr.mxu0 0.0
    %165 = vmatpush1.msra.mxu0 0.0
    %166 = vmatprep.subr.mxu0 0.0
    %167 = vmatpush1.msra.mxu0 0.0
    %168 = vmatprep.subr.mxu0 0.0
    %169 = vmatpush1.msra.mxu0 0.0
    %170 = vmatprep.subr.mxu0 0.0
    %171 = vmatpush1.msra.mxu0 0.0
    %172 = vmatprep.subr.mxu0 0.0
    %173 = vmatpush1.msra.mxu0 0.0
    %174 = vmatprep.subr.mxu0 0.0
    %175 = vmatpush1.msra.mxu0 0.0
    %176 = vmatprep.subr.mxu0 0.0
    %177 = vmatpush1.msra.mxu0 0.0
    %178 = vmatprep.subr.mxu0 0.0
    %179 = vmatpush1.msra.mxu0 0.0
    %180 = vmatprep.subr.mxu0 0.0
    %181 = vmatpush1.msra.mxu0 0.0
    %182 = vmatprep.subr.mxu0 0.0
    %183 = vmatpush1.msra.mxu0 0.0
    %184 = vmatprep.subr.mxu0 0.0
    %185 = vmatpush1.msra.mxu0 0.0
    %186 = vmatprep.subr.mxu0 0.0
    %187 = vmatpush1.msra.mxu0 0.0
    %188 = vmatprep.subr.mxu0 0.0
    %189 = vmatpush1.msra.mxu0 0.0
    %190 = vmatprep.subr.mxu0 0.0
    %191 = vmatpush1.msra.mxu0 0.0
    %192 = vmatprep.subr.mxu0 0.0
    %193 = vmatpush1.msra.mxu0 0.0
    %194 = vmatprep.subr.mxu0 0.0
    %195 = vmatpush1.msra.mxu0 0.0
    %196 = vmatprep.subr.mxu0 0.0
    %197 = vmatpush1.msra.mxu0 0.0
    %198 = vmatprep.subr.mxu0 0.0
    %199 = vmatpush1.msra.mxu0 0.0
    %200 = vmatprep.subr.mxu0 0.0
    %201 = vmatpush1.msra.mxu0 0.0
    %202 = vmatprep.subr.mxu0 0.0
    %203 = vmatpush1.msra.mxu0 0.0
    %204 = vmatprep.mubr.f32.mxu0 0.0
    %205 = vmatmul.mubr.f32.gmra.mrb[0].mxu0 %v138
    %v206 = vpop.f32.mrb[0].mxu0
    %v207 = vadd.f32 %v136, %v206
    %v208 = vpop.f32.mrb[0].mxu0
    %209 = vdwg.mxu0
    %210 = vst.msk [vmem:[#allocation2] sm:$0xff] %vm45, %v207
    %v211 = vld [vmem:[%s0 + $0x18] sm:$0xff]
    %s212 = scalar_lea.vmem [#allocation3], 64
    %v213 = vld [vmem:[%s212] sm:$0xff]
    %v214 = vld [vmem:[%s212 + $0x8] sm:$0xff]
    %v215 = vld [vmem:[%s212 + $0x10] sm:$0xff]
    %v216 = vld [vmem:[%s212 + $0x18] sm:$0xff]
    %v217 = vlaneseq
    %v218 = vshrl.u32 %v217, 7
    %v219 = vsub.s32 2, %v218
    %v220 = vrot.slane %v34, %v219
    %v222 = vsel %vm45, %v211, 0
    %224 = vmatprep.subr.mxu0 0.0
    %225 = vmatpush1.msra.mxu0 %v213
    %226 = vmatprep.subr.mxu0 0.0
    %227 = vmatpush1.msra.mxu0 %v214
    %228 = vmatprep.subr.mxu0 0.0
    %229 = vmatpush1.msra.mxu0 %v215
    %230 = vmatprep.subr.mxu0 0.0
    %231 = vmatpush1.msra.mxu0 %v216
    %232 = vmatprep.subr.mxu0 0.0
    %233 = vmatpush1.msra.mxu0 0.0
    %234 = vmatprep.subr.mxu0 0.0
    %235 = vmatpush1.msra.mxu0 0.0
    %236 = vmatprep.subr.mxu0 0.0
    %237 = vmatpush1.msra.mxu0 0.0
    %238 = vmatprep.subr.mxu0 0.0
    %239 = vmatpush1.msra.mxu0 0.0
    %240 = vmatprep.subr.mxu0 0.0
    %241 = vmatpush1.msra.mxu0 0.0
    %242 = vmatprep.subr.mxu0 0.0
    %243 = vmatpush1.msra.mxu0 0.0
    %244 = vmatprep.subr.mxu0 0.0
    %245 = vmatpush1.msra.mxu0 0.0
    %246 = vmatprep.subr.mxu0 0.0
    %247 = vmatpush1.msra.mxu0 0.0
    %248 = vmatprep.subr.mxu0 0.0
    %249 = vmatpush1.msra.mxu0 0.0
    %250 = vmatprep.subr.mxu0 0.0
    %251 = vmatpush1.msra.mxu0 0.0
    %252 = vmatprep.subr.mxu0 0.0
    %253 = vmatpush1.msra.mxu0 0.0
    %254 = vmatprep.subr.mxu0 0.0
    %255 = vmatpush1.msra.mxu0 0.0
    %256 = vmatprep.subr.mxu0 0.0
    %257 = vmatpush1.msra.mxu0 0.0
    %258 = vmatprep.subr.mxu0 0.0
    %259 = vmatpush1.msra.mxu0 0.0
    %260 = vmatprep.subr.mxu0 0.0
    %261 = vmatpush1.msra.mxu0 0.0
    %262 = vmatprep.subr.mxu0 0.0
    %263 = vmatpush1.msra.mxu0 0.0
    %264 = vmatprep.subr.mxu0 0.0
    %265 = vmatpush1.msra.mxu0 0.0
    %266 = vmatprep.subr.mxu0 0.0
    %267 = vmatpush1.msra.mxu0 0.0
    %268 = vmatprep.subr.mxu0 0.0
    %269 = vmatpush1.msra.mxu0 0.0
    %270 = vmatprep.subr.mxu0 0.0
    %271 = vmatpush1.msra.mxu0 0.0
    %272 = vmatprep.subr.mxu0 0.0
    %273 = vmatpush1.msra.mxu0 0.0
    %274 = vmatprep.subr.mxu0 0.0
    %275 = vmatpush1.msra.mxu0 0.0
    %276 = vmatprep.subr.mxu0 0.0
    %277 = vmatpush1.msra.mxu0 0.0
    %278 = vmatprep.subr.mxu0 0.0
    %279 = vmatpush1.msra.mxu0 0.0
    %280 = vmatprep.subr.mxu0 0.0
    %281 = vmatpush1.msra.mxu0 0.0
    %282 = vmatprep.subr.mxu0 0.0
    %283 = vmatpush1.msra.mxu0 0.0
    %284 = vmatprep.subr.mxu0 0.0
    %285 = vmatpush1.msra.mxu0 0.0
    %286 = vmatprep.subr.mxu0 0.0
    %287 = vmatpush1.msra.mxu0 0.0
    %288 = vmatprep.mubr.f32.mxu0 0.0
    %289 = vmatmul.mubr.f32.gmra.mrb[0].mxu0 %v222
    %v290 = vpop.f32.mrb[0].mxu0
    %v291 = vadd.f32 %v220, %v290
    %v292 = vpop.f32.mrb[0].mxu0
    %293 = vdwg.mxu0
    %294 = vst.msk [vmem:[#allocation2 + $0x8] sm:$0xff] %vm45, %v291
    %v295 = vld [vmem:[%s0 + $0x20] sm:$0xff]
    %s296 = scalar_lea.vmem [#allocation3], 96
    %v297 = vld [vmem:[%s296] sm:$0xff]
    %v298 = vld [vmem:[%s296 + $0x8] sm:$0xff]
    %v299 = vld [vmem:[%s296 + $0x10] sm:$0xff]
    %v300 = vld [vmem:[%s296 + $0x18] sm:$0xff]
    %v301 = vlaneseq
    %v302 = vshrl.u32 %v301, 7
    %v303 = vsub.s32 3, %v302
    %v304 = vrot.slane %v34, %v303
    %v306 = vsel %vm45, %v295, 0
    %308 = vmatprep.subr.mxu0 0.0
    %309 = vmatpush1.msra.mxu0 %v297
    %310 = vmatprep.subr.mxu0 0.0
    %311 = vmatpush1.msra.mxu0 %v298
    %312 = vmatprep.subr.mxu0 0.0
    %313 = vmatpush1.msra.mxu0 %v299
    %314 = vmatprep.subr.mxu0 0.0
    %315 = vmatpush1.msra.mxu0 %v300
    %316 = vmatprep.subr.mxu0 0.0
    %317 = vmatpush1.msra.mxu0 0.0
    %318 = vmatprep.subr.mxu0 0.0
    %319 = vmatpush1.msra.mxu0 0.0
    %320 = vmatprep.subr.mxu0 0.0
    %321 = vmatpush1.msra.mxu0 0.0
    %322 = vmatprep.subr.mxu0 0.0
    %323 = vmatpush1.msra.mxu0 0.0
    %324 = vmatprep.subr.mxu0 0.0
    %325 = vmatpush1.msra.mxu0 0.0
    %326 = vmatprep.subr.mxu0 0.0
    %327 = vmatpush1.msra.mxu0 0.0
    %328 = vmatprep.subr.mxu0 0.0
    %329 = vmatpush1.msra.mxu0 0.0
    %330 = vmatprep.subr.mxu0 0.0
    %331 = vmatpush1.msra.mxu0 0.0
    %332 = vmatprep.subr.mxu0 0.0
    %333 = vmatpush1.msra.mxu0 0.0
    %334 = vmatprep.subr.mxu0 0.0
    %335 = vmatpush1.msra.mxu0 0.0
    %336 = vmatprep.subr.mxu0 0.0
    %337 = vmatpush1.msra.mxu0 0.0
    %338 = vmatprep.subr.mxu0 0.0
    %339 = vmatpush1.msra.mxu0 0.0
    %340 = vmatprep.subr.mxu0 0.0
    %341 = vmatpush1.msra.mxu0 0.0
    %342 = vmatprep.subr.mxu0 0.0
    %343 = vmatpush1.msra.mxu0 0.0
    %344 = vmatprep.subr.mxu0 0.0
    %345 = vmatpush1.msra.mxu0 0.0
    %346 = vmatprep.subr.mxu0 0.0
    %347 = vmatpush1.msra.mxu0 0.0
    %348 = vmatprep.subr.mxu0 0.0
    %349 = vmatpush1.msra.mxu0 0.0
    %350 = vmatprep.subr.mxu0 0.0
    %351 = vmatpush1.msra.mxu0 0.0
    %352 = vmatprep.subr.mxu0 0.0
    %353 = vmatpush1.msra.mxu0 0.0
    %354 = vmatprep.subr.mxu0 0.0
    %355 = vmatpush1.msra.mxu0 0.0
    %356 = vmatprep.subr.mxu0 0.0
    %357 = vmatpush1.msra.mxu0 0.0
    %358 = vmatprep.subr.mxu0 0.0
    %359 = vmatpush1.msra.mxu0 0.0
    %360 = vmatprep.subr.mxu0 0.0
    %361 = vmatpush1.msra.mxu0 0.0
    %362 = vmatprep.subr.mxu0 0.0
    %363 = vmatpush1.msra.mxu0 0.0
    %364 = vmatprep.subr.mxu0 0.0
    %365 = vmatpush1.msra.mxu0 0.0
    %366 = vmatprep.subr.mxu0 0.0
    %367 = vmatpush1.msra.mxu0 0.0
    %368 = vmatprep.subr.mxu0 0.0
    %369 = vmatpush1.msra.mxu0 0.0
    %370 = vmatprep.subr.mxu0 0.0
    %371 = vmatpush1.msra.mxu0 0.0
    %372 = vmatprep.mubr.f32.mxu0 0.0
    %373 = vmatmul.mubr.f32.gmra.mrb[0].mxu0 %v306
    %v374 = vpop.f32.mrb[0].mxu0
    %v375 = vadd.f32 %v304, %v374
    %v376 = vpop.f32.mrb[0].mxu0
    %377 = vdwg.mxu0
    %378 = vst.msk [vmem:[#allocation2 + $0x10] sm:$0xff] %vm45, %v375
    %v379 = vld [vmem:[%s0 + $0x28] sm:$0xff]
    %s380 = scalar_lea.vmem [#allocation3], 128
    %v381 = vld [vmem:[%s380] sm:$0xff]
    %v382 = vld [vmem:[%s380 + $0x8] sm:$0xff]
    %v383 = vld [vmem:[%s380 + $0x10] sm:$0xff]
    %v384 = vld [vmem:[%s380 + $0x18] sm:$0xff]
    %v385 = vlaneseq
    %v386 = vshrl.u32 %v385, 7
    %v387 = vsub.s32 4, %v386
    %v388 = vrot.slane %v34, %v387
    %v390 = vsel %vm45, %v379, 0
    %392 = vmatprep.subr.mxu0 0.0
    %393 = vmatpush1.msra.mxu0 %v381
    %394 = vmatprep.subr.mxu0 0.0
    %395 = vmatpush1.msra.mxu0 %v382
    %396 = vmatprep.subr.mxu0 0.0
    %397 = vmatpush1.msra.mxu0 %v383
    %398 = vmatprep.subr.mxu0 0.0
    %399 = vmatpush1.msra.mxu0 %v384
    %400 = vmatprep.subr.mxu0 0.0
    %401 = vmatpush1.msra.mxu0 0.0
    %402 = vmatprep.subr.mxu0 0.0
    %403 = vmatpush1.msra.mxu0 0.0
    %404 = vmatprep.subr.mxu0 0.0
    %405 = vmatpush1.msra.mxu0 0.0
    %406 = vmatprep.subr.mxu0 0.0
    %407 = vmatpush1.msra.mxu0 0.0
    %408 = vmatprep.subr.mxu0 0.0
    %409 = vmatpush1.msra.mxu0 0.0
    %410 = vmatprep.subr.mxu0 0.0
    %411 = vmatpush1.msra.mxu0 0.0
    %412 = vmatprep.subr.mxu0 0.0
    %413 = vmatpush1.msra.mxu0 0.0
    %414 = vmatprep.subr.mxu0 0.0
    %415 = vmatpush1.msra.mxu0 0.0
    %416 = vmatprep.subr.mxu0 0.0
    %417 = vmatpush1.msra.mxu0 0.0
    %418 = vmatprep.subr.mxu0 0.0
    %419 = vmatpush1.msra.mxu0 0.0
    %420 = vmatprep.subr.mxu0 0.0
    %421 = vmatpush1.msra.mxu0 0.0
    %422 = vmatprep.subr.mxu0 0.0
    %423 = vmatpush1.msra.mxu0 0.0
    %424 = vmatprep.subr.mxu0 0.0
    %425 = vmatpush1.msra.mxu0 0.0
    %426 = vmatprep.subr.mxu0 0.0
    %427 = vmatpush1.msra.mxu0 0.0
    %428 = vmatprep.subr.mxu0 0.0
    %429 = vmatpush1.msra.mxu0 0.0
    %430 = vmatprep.subr.mxu0 0.0
    %431 = vmatpush1.msra.mxu0 0.0
    %432 = vmatprep.subr.mxu0 0.0
    %433 = vmatpush1.msra.mxu0 0.0
    %434 = vmatprep.subr.mxu0 0.0
    %435 = vmatpush1.msra.mxu0 0.0
    %436 = vmatprep.subr.mxu0 0.0
    %437 = vmatpush1.msra.mxu0 0.0
    %438 = vmatprep.subr.mxu0 0.0
    %439 = vmatpush1.msra.mxu0 0.0
    %440 = vmatprep.subr.mxu0 0.0
    %441 = vmatpush1.msra.mxu0 0.0
    %442 = vmatprep.subr.mxu0 0.0
    %443 = vmatpush1.msra.mxu0 0.0
    %444 = vmatprep.subr.mxu0 0.0
    %445 = vmatpush1.msra.mxu0 0.0
    %446 = vmatprep.subr.mxu0 0.0
    %447 = vmatpush1.msra.mxu0 0.0
    %448 = vmatprep.subr.mxu0 0.0
    %449 = vmatpush1.msra.mxu0 0.0
    %450 = vmatprep.subr.mxu0 0.0
    %451 = vmatpush1.msra.mxu0 0.0
    %452 = vmatprep.subr.mxu0 0.0
    %453 = vmatpush1.msra.mxu0 0.0
    %454 = vmatprep.subr.mxu0 0.0
    %455 = vmatpush1.msra.mxu0 0.0
    %456 = vmatprep.mubr.f32.mxu0 0.0
    %457 = vmatmul.mubr.f32.gmra.mrb[0].mxu0 %v390
    %v458 = vpop.f32.mrb[0].mxu0
    %v459 = vadd.f32 %v388, %v458
    %v460 = vpop.f32.mrb[0].mxu0
    %461 = vdwg.mxu0
    %462 = vst.msk [vmem:[#allocation2 + $0x18] sm:$0xff] %vm45, %v459
    %v463 = vld [vmem:[%s0 + $0x30] sm:$0xff]
    %v464 = vld [vmem:[%s0 + $0x38] sm:$0xff]
    %v465 = vld [vmem:[%s0 + $0x40] sm:$0xff]
    %s466 = scalar_lea.vmem [#allocation3], 160
    %v467 = vld [vmem:[%s466] sm:$0xff]
    %v468 = vld [vmem:[%s466 + $0x8] sm:$0xff]
    %v469 = vld [vmem:[%s466 + $0x10] sm:$0xff]
    %v470 = vld [vmem:[%s466 + $0x18] sm:$0xff]
    %v471 = vlaneseq
    %v472 = vshrl.u32 %v471, 7
    %v473 = vsub.s32 5, %v472
    %v474 = vrot.slane %v34, %v473
    %v476 = vsel %vm45, %v463, 0
    %v479 = vsel %vm45, %v464, 0
    %v482 = vsel %vm45, %v465, 0
    %484 = vmatprep.subr.mxu0 0.0
    %485 = vmatpush1.msra.mxu0 %v467
    %486 = vmatprep.subr.mxu0 0.0
    %487 = vmatpush1.msra.mxu0 %v468
    %488 = vmatprep.subr.mxu0 0.0
    %489 = vmatpush1.msra.mxu0 %v469
    %490 = vmatprep.subr.mxu0 0.0
    %491 = vmatpush1.msra.mxu0 %v470
    %492 = vmatprep.subr.mxu0 0.0
    %493 = vmatpush1.msra.mxu0 0.0
    %494 = vmatprep.subr.mxu0 0.0
    %495 = vmatpush1.msra.mxu0 0.0
    %496 = vmatprep.subr.mxu0 0.0
    %497 = vmatpush1.msra.mxu0 0.0
    %498 = vmatprep.subr.mxu0 0.0
    %499 = vmatpush1.msra.mxu0 0.0
    %500 = vmatprep.subr.mxu0 0.0
    %501 = vmatpush1.msra.mxu0 0.0
    %502 = vmatprep.subr.mxu0 0.0
    %503 = vmatpush1.msra.mxu0 0.0
    %504 = vmatprep.subr.mxu0 0.0
    %505 = vmatpush1.msra.mxu0 0.0
    %506 = vmatprep.subr.mxu0 0.0
    %507 = vmatpush1.msra.mxu0 0.0
    %508 = vmatprep.subr.mxu0 0.0
    %509 = vmatpush1.msra.mxu0 0.0
    %510 = vmatprep.subr.mxu0 0.0
    %511 = vmatpush1.msra.mxu0 0.0
    %512 = vmatprep.subr.mxu0 0.0
    %513 = vmatpush1.msra.mxu0 0.0
    %514 = vmatprep.subr.mxu0 0.0
    %515 = vmatpush1.msra.mxu0 0.0
    %516 = vmatprep.subr.mxu0 0.0
    %517 = vmatpush1.msra.mxu0 0.0
    %518 = vmatprep.subr.mxu0 0.0
    %519 = vmatpush1.msra.mxu0 0.0
    %520 = vmatprep.subr.mxu0 0.0
    %521 = vmatpush1.msra.mxu0 0.0
    %522 = vmatprep.subr.mxu0 0.0
    %523 = vmatpush1.msra.mxu0 0.0
    %524 = vmatprep.subr.mxu0 0.0
    %525 = vmatpush1.msra.mxu0 0.0
    %526 = vmatprep.subr.mxu0 0.0
    %527 = vmatpush1.msra.mxu0 0.0
    %528 = vmatprep.subr.mxu0 0.0
    %529 = vmatpush1.msra.mxu0 0.0
    %530 = vmatprep.subr.mxu0 0.0
    %531 = vmatpush1.msra.mxu0 0.0
    %532 = vmatprep.subr.mxu0 0.0
    %533 = vmatpush1.msra.mxu0 0.0
    %534 = vmatprep.subr.mxu0 0.0
    %535 = vmatpush1.msra.mxu0 0.0
    %536 = vmatprep.subr.mxu0 0.0
    %537 = vmatpush1.msra.mxu0 0.0
    %538 = vmatprep.subr.mxu0 0.0
    %539 = vmatpush1.msra.mxu0 0.0
    %540 = vmatprep.subr.mxu0 0.0
    %541 = vmatpush1.msra.mxu0 0.0
    %542 = vmatprep.subr.mxu0 0.0
    %543 = vmatpush1.msra.mxu0 0.0
    %544 = vmatprep.subr.mxu0 0.0
    %545 = vmatpush1.msra.mxu0 0.0
    %546 = vmatprep.subr.mxu0 0.0
    %547 = vmatpush1.msra.mxu0 0.0
    %548 = vmatprep.mubr.f32.mxu0 0.0
    %549 = vmatmul.mubr.f32.gmra.mrb[0].mxu0 %v476
    %v550 = vpop.f32.mrb[0].mxu0
    %v551 = vadd.f32 %v474, %v550
    %v552 = vpop.f32.mrb[0].mxu0
    %553 = vmatprep.mubr.f32.mxu0 0.0
    %554 = vmatmul.mubr.f32.gmra.mrb[0].mxu0 %v479
    %v555 = vpop.f32.mrb[0].mxu0
    %v556 = vadd.f32 %v474, %v555
    %v557 = vpop.f32.mrb[0].mxu0
    %558 = vmatprep.mubr.f32.mxu0 0.0
    %559 = vmatmul.mubr.f32.gmra.mrb[0].mxu0 %v482
    %v560 = vpop.f32.mrb[0].mxu0
    %v561 = vadd.f32 %v474, %v560
    %v562 = vpop.f32.mrb[0].mxu0
    %563 = vdwg.mxu0
    %564 = vst.msk [vmem:[#allocation2 + $0x20] sm:$0xff] %vm45, %v551
    %565 = vst.msk [vmem:[#allocation2 + $0x28] sm:$0xff] %vm45, %v556
    %566 = vst.msk [vmem:[#allocation2 + $0x30] sm:$0xff] %vm45, %v561
    %v567 = vld [vmem:[%s3] sm:$0xff]
    %v568 = vld [vmem:[%s3 + $0x8] sm:$0xff]
    %v569 = vld [vmem:[#allocation2] sm:$0xff]
    %v570 = vld [vmem:[#allocation2 + $0x8] sm:$0xff]
    %v571 = vld [vmem:[#allocation2 + $0x10] sm:$0xff]
    %v572 = vld [vmem:[#allocation2 + $0x18] sm:$0xff]
    %v573 = vld [vmem:[#allocation2 + $0x20] sm:$0xff]
    %v574 = vld [vmem:[#allocation2 + $0x28] sm:$0xff]
    %v575 = vld [vmem:[#allocation2 + $0x30] sm:$0xff]
    %vm576 = vcmask 457728
    %v578 = vsel %vm576, %v567, 0
    %v581 = vsel %vm576, %v568, 0
    %583 = vmatprep.subr.mxu0 0.0
    %584 = vmatpush1.msra.mxu0 %v569
    %585 = vmatprep.subr.mxu0 0.0
    %586 = vmatpush1.msra.mxu0 %v570
    %587 = vmatprep.subr.mxu0 0.0
    %588 = vmatpush1.msra.mxu0 %v571
    %589 = vmatprep.subr.mxu0 0.0
    %590 = vmatpush1.msra.mxu0 %v572
    %591 = vmatprep.subr.mxu0 0.0
    %592 = vmatpush1.msra.mxu0 %v573
    %593 = vmatprep.subr.mxu0 0.0
    %594 = vmatpush1.msra.mxu0 %v574
    %595 = vmatprep.subr.mxu0 0.0
    %596 = vmatpush1.msra.mxu0 %v575
    %597 = vmatprep.subr.mxu0 0.0
    %598 = vmatpush1.msra.mxu0 0.0
    %599 = vmatprep.subr.mxu0 0.0
    %600 = vmatpush1.msra.mxu0 0.0
    %601 = vmatprep.subr.mxu0 0.0
    %602 = vmatpush1.msra.mxu0 0.0
    %603 = vmatprep.subr.mxu0 0.0
    %604 = vmatpush1.msra.mxu0 0.0
    %605 = vmatprep.subr.mxu0 0.0
    %606 = vmatpush1.msra.mxu0 0.0
    %607 = vmatprep.subr.mxu0 0.0
    %608 = vmatpush1.msra.mxu0 0.0
    %609 = vmatprep.subr.mxu0 0.0
    %610 = vmatpush1.msra.mxu0 0.0
    %611 = vmatprep.subr.mxu0 0.0
    %612 = vmatpush1.msra.mxu0 0.0
    %613 = vmatprep.subr.mxu0 0.0
    %614 = vmatpush1.msra.mxu0 0.0
    %615 = vmatprep.subr.mxu0 0.0
    %616 = vmatpush1.msra.mxu0 0.0
    %617 = vmatprep.subr.mxu0 0.0
    %618 = vmatpush1.msra.mxu0 0.0
    %619 = vmatprep.subr.mxu0 0.0
    %620 = vmatpush1.msra.mxu0 0.0
    %621 = vmatprep.subr.mxu0 0.0
    %622 = vmatpush1.msra.mxu0 0.0
    %623 = vmatprep.subr.mxu0 0.0
    %624 = vmatpush1.msra.mxu0 0.0
    %625 = vmatprep.subr.mxu0 0.0
    %626 = vmatpush1.msra.mxu0 0.0
    %627 = vmatprep.subr.mxu0 0.0
    %628 = vmatpush1.msra.mxu0 0.0
    %629 = vmatprep.subr.mxu0 0.0
    %630 = vmatpush1.msra.mxu0 0.0
    %631 = vmatprep.subr.mxu0 0.0
    %632 = vmatpush1.msra.mxu0 0.0
    %633 = vmatprep.subr.mxu0 0.0
    %634 = vmatpush1.msra.mxu0 0.0
    %635 = vmatprep.subr.mxu0 0.0
    %636 = vmatpush1.msra.mxu0 0.0
    %637 = vmatprep.subr.mxu0 0.0
    %638 = vmatpush1.msra.mxu0 0.0
    %639 = vmatprep.subr.mxu0 0.0
    %640 = vmatpush1.msra.mxu0 0.0
    %641 = vmatprep.subr.mxu0 0.0
    %642 = vmatpush1.msra.mxu0 0.0
    %643 = vmatprep.subr.mxu0 0.0
    %644 = vmatpush1.msra.mxu0 0.0
    %645 = vmatprep.subr.mxu0 0.0
    %646 = vmatpush1.msra.mxu0 0.0
    %647 = vmatprep.mubr.f32.mxu0 0.0
    %648 = vmatmul.mubr.f32.gmra.mrb[0].mxu0 %v578
    %v649 = vpop.f32.mrb[0].mxu0
    %v650 = vadd.f32 0.0, %v649
    %v651 = vpop.f32.mrb[0].mxu0
    %652 = vmatprep.mubr.f32.mxu0 0.0
    %653 = vmatmul.mubr.f32.gmra.mrb[0].mxu0 %v581
    %v654 = vpop.f32.mrb[0].mxu0
    %v655 = vadd.f32 0.0, %v654
    %v656 = vpop.f32.mrb[0].mxu0
    %657 = vdwg.mxu0
    %v658 = vmax.f32 %v650, 0.0
    %v659 = vmax.f32 %v655, 0.0
    %660 = vst.msk [vmem:[%s5] sm:$0xff] %vm45, %v658
    %661 = vst.msk [vmem:[%s5 + $0x8] sm:$0xff] %vm45, %v659
    %v662 = vld [vmem:[%s4] sm:$0xff]
    %v663 = vld [vmem:[%s4 + $0x8] sm:$0xff]
    %v664 = vld [vmem:[%s4 + $0x10] sm:$0xff]
    %v665 = vld [vmem:[%s4 + $0x18] sm:$0xff]
    %v666 = vld [vmem:[%s4 + $0x20] sm:$0xff]
    %v667 = vld [vmem:[%s4 + $0x28] sm:$0xff]
    %v668 = vld [vmem:[%s4 + $0x30] sm:$0xff]
    %vm669 = vcmask 130048
    %v671 = vsel %vm669, %v662, 0
    %v674 = vsel %vm669, %v663, 0
    %v677 = vsel %vm669, %v664, 0
    %v680 = vsel %vm669, %v665, 0
    %v683 = vsel %vm669, %v666, 0
    %v686 = vsel %vm669, %v667, 0
    %v689 = vsel %vm669, %v668, 0
    %691 = vmatprep.subr.mxu0 0.0
    %692 = vmatpush1.msra.mxu0 %v119
    %693 = vmatprep.subr.mxu0 0.0
    %694 = vmatpush1.msra.mxu0 %v124
    %695 = vmatprep.subr.mxu0 0.0
    %696 = vmatpush1.msra.mxu0 0.0
    %697 = vmatprep.subr.mxu0 0.0
    %698 = vmatpush1.msra.mxu0 0.0
    %699 = vmatprep.subr.mxu0 0.0
    %700 = vmatpush1.msra.mxu0 0.0
    %701 = vmatprep.subr.mxu0 0.0
    %702 = vmatpush1.msra.mxu0 0.0
    %703 = vmatprep.subr.mxu0 0.0
    %704 = vmatpush1.msra.mxu0 0.0
    %705 = vmatprep.subr.mxu0 0.0
    %706 = vmatpush1.msra.mxu0 0.0
    %707 = vmatprep.subr.mxu0 0.0
    %708 = vmatpush1.msra.mxu0 0.0
    %709 = vmatprep.subr.mxu0 0.0
    %710 = vmatpush1.msra.mxu0 0.0
    %711 = vmatprep.subr.mxu0 0.0
    %712 = vmatpush1.msra.mxu0 0.0
    %713 = vmatprep.subr.mxu0 0.0
    %714 = vmatpush1.msra.mxu0 0.0
    %715 = vmatprep.subr.mxu0 0.0
    %716 = vmatpush1.msra.mxu0 0.0
    %717 = vmatprep.subr.mxu0 0.0
    %718 = vmatpush1.msra.mxu0 0.0
    %719 = vmatprep.subr.mxu0 0.0
    %720 = vmatpush1.msra.mxu0 0.0
    %721 = vmatprep.subr.mxu0 0.0
    %722 = vmatpush1.msra.mxu0 0.0
    %723 = vmatprep.subr.mxu0 0.0
    %724 = vmatpush1.msra.mxu0 0.0
    %725 = vmatprep.subr.mxu0 0.0
    %726 = vmatpush1.msra.mxu0 0.0
    %727 = vmatprep.subr.mxu0 0.0
    %728 = vmatpush1.msra.mxu0 0.0
    %729 = vmatprep.subr.mxu0 0.0
    %730 = vmatpush1.msra.mxu0 0.0
    %731 = vmatprep.subr.mxu0 0.0
    %732 = vmatpush1.msra.mxu0 0.0
    %733 = vmatprep.subr.mxu0 0.0
    %734 = vmatpush1.msra.mxu0 0.0
    %735 = vmatprep.subr.mxu0 0.0
    %736 = vmatpush1.msra.mxu0 0.0
    %737 = vmatprep.subr.mxu0 0.0
    %738 = vmatpush1.msra.mxu0 0.0
    %739 = vmatprep.subr.mxu0 0.0
    %740 = vmatpush1.msra.mxu0 0.0
    %741 = vmatprep.subr.mxu0 0.0
    %742 = vmatpush1.msra.mxu0 0.0
    %743 = vmatprep.subr.mxu0 0.0
    %744 = vmatpush1.msra.mxu0 0.0
    %745 = vmatprep.subr.mxu0 0.0
    %746 = vmatpush1.msra.mxu0 0.0
    %747 = vmatprep.subr.mxu0 0.0
    %748 = vmatpush1.msra.mxu0 0.0
    %749 = vmatprep.subr.mxu0 0.0
    %750 = vmatpush1.msra.mxu0 0.0
    %751 = vmatprep.subr.mxu0 0.0
    %752 = vmatpush1.msra.mxu0 0.0
    %753 = vmatprep.subr.mxu0 0.0
    %754 = vmatpush1.msra.mxu0 0.0
    %755 = vmatprep.mubr.f32.mxu0 0.0
    %756 = vmatmul.mubr.f32.gmra.mrb[0].mxu0 %v671
    %v757 = vpop.f32.mrb[0].mxu0
    %v758 = vadd.f32 0.0, %v757
    %v759 = vpop.f32.mrb[0].mxu0
    %760 = vmatprep.mubr.f32.mxu0 0.0
    %761 = vmatmul.mubr.f32.gmra.mrb[0].mxu0 %v674
    %v762 = vpop.f32.mrb[0].mxu0
    %v763 = vadd.f32 0.0, %v762
    %v764 = vpop.f32.mrb[0].mxu0
    %765 = vmatprep.mubr.f32.mxu0 0.0
    %766 = vmatmul.mubr.f32.gmra.mrb[0].mxu0 %v677
    %v767 = vpop.f32.mrb[0].mxu0
    %v768 = vadd.f32 0.0, %v767
    %v769 = vpop.f32.mrb[0].mxu0
    %770 = vmatprep.mubr.f32.mxu0 0.0
    %771 = vmatmul.mubr.f32.gmra.mrb[0].mxu0 %v680
    %v772 = vpop.f32.mrb[0].mxu0
    %v773 = vadd.f32 0.0, %v772
    %v774 = vpop.f32.mrb[0].mxu0
    %775 = vmatprep.mubr.f32.mxu0 0.0
    %776 = vmatmul.mubr.f32.gmra.mrb[0].mxu0 %v683
    %v777 = vpop.f32.mrb[0].mxu0
    %v778 = vadd.f32 0.0, %v777
    %v779 = vpop.f32.mrb[0].mxu0
    %780 = vmatprep.mubr.f32.mxu0 0.0
    %781 = vmatmul.mubr.f32.gmra.mrb[0].mxu0 %v686
    %v782 = vpop.f32.mrb[0].mxu0
    %v783 = vadd.f32 0.0, %v782
    %v784 = vpop.f32.mrb[0].mxu0
    %785 = vmatprep.mubr.f32.mxu0 0.0
    %786 = vmatmul.mubr.f32.gmra.mrb[0].mxu0 %v689
    %v787 = vpop.f32.mrb[0].mxu0
    %v788 = vadd.f32 0.0, %v787
    %v789 = vpop.f32.mrb[0].mxu0
    %790 = vdwg.mxu0
    %v791 = vmax.f32 %v758, 0.0
    %v792 = vmax.f32 %v763, 0.0
    %v793 = vmax.f32 %v768, 0.0
    %v794 = vmax.f32 %v773, 0.0
    %v795 = vmax.f32 %v778, 0.0
    %v796 = vmax.f32 %v783, 0.0
    %v797 = vmax.f32 %v788, 0.0
    %798 = vst.msk [vmem:[%s5 + $0x10] sm:$0xff] %vm45, %v791
    %799 = vst.msk [vmem:[%s5 + $0x18] sm:$0xff] %vm45, %v792
    %800 = vst.msk [vmem:[%s5 + $0x20] sm:$0xff] %vm45, %v793
    %801 = vst.msk [vmem:[%s5 + $0x28] sm:$0xff] %vm45, %v794
    %802 = vst.msk [vmem:[%s5 + $0x30] sm:$0xff] %vm45, %v795
    %803 = vst.msk [vmem:[%s5 + $0x38] sm:$0xff] %vm45, %v796
    %804 = vst.msk [vmem:[%s5 + $0x40] sm:$0xff] %vm45, %v797
    // Predicated region
    $region26: #{tpu_custom_call.1} parent=1 // pred_check
      _
    $region27: #{tpu_custom_call.1} parent=1 // pred_check_branch
      %806 = sbr.rel (0) target = $region29
    $region28: #{tpu_custom_call.1} parent=1 // pred_region
      _
    $region29: #{tpu_custom_call.1} parent=1 // pred_fallthru
      _
    // Predicated region
    $region30: #{tpu_custom_call.1} parent=1 // pred_check
      _
    $region31: #{tpu_custom_call.1} parent=1 // pred_check_branch
      %808 = sbr.rel (0) target = $region33
    $region32: #{tpu_custom_call.1} parent=1 // pred_region
      _
    $region33: #{tpu_custom_call.1} parent=1 // pred_fallthru
      _
    %809 = vsyncpa [#allocation4], 1

</llo_original>
